<compile_context>
chip_gen: v6e
topology: v6e:2x2x1
jax: 0.10.0
libtpu: 0.0.40
codegen_flags: <defaults>
</compile_context>

<pallas_src>
import math

import jax
import jax.numpy as jnp
from jax.experimental import pallas as pl
from jax.experimental.pallas import tpu as pltpu

# Total VMEM budget for the double-buffered (input + output) row tiles.
# ~24 MiB -> ~6 MiB per buffer: amortizes the ~0.35 us per-grid-step overhead
# (matters most on v7x's faster HBM) while fitting v7x's 64 MiB physical VMEM
# and, with the raised vmem_limit_bytes below, v5e/v6e as well.
_TILE_BUDGET_BYTES = 24 * 1024 * 1024
_VMEM_LIMIT_BYTES = 48 * 1024 * 1024
# Below this (input + output) size, plain XLA elementwise beats the kernel.
_SMALL_INPUT_BYTES = 128 * 1024


def _layer_scale_kernel(x_ref, gamma_ref, o_ref):
    # x_ref: (TR, D) row tile; gamma_ref: (1, D) resident scale row.
    x = x_ref[...].astype(o_ref.dtype)
    g = gamma_ref[...].astype(o_ref.dtype)
    o_ref[...] = x * g  # (1, D) sublane-broadcasts against (TR, D): pure VPU


def layer_scale(x: jax.Array, gamma: jax.Array, *, promote_dtype: bool = True) -> jax.Array:
    """y = x * gamma (gamma broadcast over leading axes), like LayerScale.forward.

    promote_dtype=True  -> output dtype = promote(x, gamma)  (PyTorch parity).
    promote_dtype=False -> output dtype = x.dtype (e.g. bf16 in -> bf16 out),
                           halving HBM write bytes for bf16 activations.
    """
    *lead, D = x.shape
    assert gamma.shape == (D,), f"gamma shape {gamma.shape} != ({D},)"

    if promote_dtype:
        out_dtype = jnp.promote_types(x.dtype, gamma.dtype)
    else:
        out_dtype = x.dtype
        gamma = gamma.astype(out_dtype)

    # Empty input: nothing to do (avoid a zero-length grid).
    if x.size == 0:
        return jnp.zeros(x.shape, dtype=out_dtype)

    in_item = jnp.dtype(x.dtype).itemsize
    out_item = jnp.dtype(out_dtype).itemsize
    gamma_item = jnp.dtype(gamma.dtype).itemsize

    # Flatten all leading axes into a single row axis.
    R = int(math.prod(lead)) if lead else 1

    # Small-input fast path: launch + pipeline setup would dominate.
    if R * D * (in_item + out_item) <= _SMALL_INPUT_BYTES:
        return (x * gamma).astype(out_dtype)

    x2 = x.reshape(R, D)
    gamma2 = gamma.reshape(1, D)

    # Row tile: budget covers double-buffered input AND (promoted) output tiles.
    # TR must be a multiple of the sublane packing for both dtypes.
    sublane = max(8, 32 // in_item, 32 // out_item)
    bytes_per_row = D * (in_item + out_item) * 2  # x2: double buffering
    tr = (_TILE_BUDGET_BYTES // bytes_per_row) // sublane * sublane
    tr = max(sublane, min(tr, pl.cdiv(R, sublane) * sublane))

    grid = (pl.cdiv(R, tr),)  # partial final block handled by Pallas masking

    cost = pl.CostEstimate(
        flops=R * D,
        transcendentals=0,
        bytes_accessed=R * D * in_item + R * D * out_item + D * gamma_item,
    )

    y2 = pl.pallas_call(
        _layer_scale_kernel,
        out_shape=jax.ShapeDtypeStruct((R, D), out_dtype),
        grid_spec=pltpu.PrefetchScalarGridSpec(
            num_scalar_prefetch=0,
            grid=grid,
            in_specs=[
                # Last block dim == full D: no padding needed even when
                # D % 128 != 0 (only the final lane column is masked).
                pl.BlockSpec((tr, D), lambda i: (i, 0)),
                pl.BlockSpec((1, D), lambda i: (0, 0)),  # resident gamma, no re-DMA
            ],
            out_specs=pl.BlockSpec((tr, D), lambda i: (i, 0)),
        ),
        compiler_params=pltpu.CompilerParams(
            dimension_semantics=("parallel",),  # shards across v7x's 2 TCs
            vmem_limit_bytes=_VMEM_LIMIT_BYTES,
        ),
        cost_estimate=cost,
    )(x2, gamma2)

    return y2.reshape(*lead, D)


if __name__ == "__main__":
    # Small ViT-style shapes: (batch, tokens, dim).  dim=192 (ViT-Tiny) is NOT
    # a multiple of 128, exercising the full-extent / masked-edge-lane path.
    B, N, D = 2, 128, 192
    init_values = 1e-5

    key = jax.random.PRNGKey(0)
    x = jax.random.normal(key, (B, N, D), dtype=jnp.float32)

    # Deterministic parameter init, matching nn.Parameter(init_values * torch.ones(dim)).
    gamma = init_values * jnp.ones((D,), dtype=jnp.float32)

    # f32 path (PyTorch-parity promotion).
    y = layer_scale(x, gamma)
    jax.block_until_ready(y)
    ref = x * gamma.reshape(1, 1, D)
    assert y.shape == ref.shape and y.dtype == ref.dtype
    assert jnp.allclose(y, ref, atol=1e-6, rtol=1e-6)

    # bf16 activation path with non-promoted (bf16) output: half the write bytes.
    xb = x.astype(jnp.bfloat16)
    yb = layer_scale(xb, gamma, promote_dtype=False)
    jax.block_until_ready(yb)
    refb = xb * gamma.astype(jnp.bfloat16)
    assert yb.dtype == jnp.bfloat16
    assert jnp.allclose(yb.astype(jnp.float32), refb.astype(jnp.float32), atol=1e-2, rtol=1e-2)

    # Tiny input takes the plain-XLA fast path (no pallas_call).
    xs = jax.random.normal(key, (2, 8, 32), dtype=jnp.float32)
    gs = init_values * jnp.ones((32,), dtype=jnp.float32)
    ys = layer_scale(xs, gs)
    assert jnp.allclose(ys, xs * gs.reshape(1, 1, 32), atol=1e-6, rtol=1e-6)

    print("KERNEL_OK")
</pallas_src>

<mosaic_0001>
module attributes {stable_mosaic.version = 11 : i64} {
  func.func @_layer_scale_kernel(%arg0: i32, %arg1: memref<256x192xf32, #tpu.memory_space<vmem>>, %arg2: memref<1x192xf32, #tpu.memory_space<vmem>>, %arg3: memref<256x192xf32, #tpu.memory_space<vmem>>) attributes {dimension_semantics = [#tpu.dimension_semantics<parallel>], iteration_bounds = array<i64: 1>, scalar_prefetch = 0 : i64, scratch_operands = 0 : i64, tpu.core_type = #tpu.core_type<tc>, window_params = [{transform_indices = @transform_0, window_bounds = array<i64: 256, 192>}, {pipeline_mode = #tpu.pipeline_mode<synchronous>, transform_indices = @transform_1, window_bounds = array<i64: 1, 192>}, {transform_indices = @transform_2, window_bounds = array<i64: 256, 192>}]} {
    %c0 = arith.constant 0 : index
    %c0_0 = arith.constant 0 : index
    %0 = vector.load %arg1[%c0, %c0_0] : memref<256x192xf32, #tpu.memory_space<vmem>>, vector<256x192xf32>
    %c0_1 = arith.constant 0 : index
    %c0_2 = arith.constant 0 : index
    %1 = vector.load %arg2[%c0_1, %c0_2] : memref<1x192xf32, #tpu.memory_space<vmem>>, vector<1x192xf32>
    %2 = vector.broadcast %1 : vector<1x192xf32> to vector<256x192xf32>
    %3 = arith.mulf %0, %2 : vector<256x192xf32>
    %c0_3 = arith.constant 0 : index
    %c0_4 = arith.constant 0 : index
    %4 = vector.load %arg3[%c0_3, %c0_4] : memref<256x192xf32, #tpu.memory_space<vmem>>, vector<256x192xf32>
    tpu.vector_store %arg3[%c0_3, %c0_4], %3 {strides = array<i32>} : memref<256x192xf32, #tpu.memory_space<vmem>>, vector<256x192xf32>,
    return
  }
  func.func @transform_0(%arg0: i32) -> (i32, i32) {
    %c0_i32 = arith.constant 0 : i32
    %c0_i32_0 = arith.constant 0 : i32
    return %arg0, %c0_i32 : i32, i32
  }
  func.func @transform_1(%arg0: i32) -> (i32, i32) {
    %c0_i32 = arith.constant 0 : i32
    %c0_i32_0 = arith.constant 0 : i32
    %c0_i32_1 = arith.constant 0 : i32
    return %c0_i32, %c0_i32_0 : i32, i32
  }
  func.func @transform_2(%arg0: i32) -> (i32, i32) {
    %c0_i32 = arith.constant 0 : i32
    %c0_i32_0 = arith.constant 0 : i32
    return %arg0, %c0_i32 : i32, i32
  }
}

</mosaic_0001>

<llo_original>
// kernel: tpu_custom_call.1
$region0: #{tpu_custom_call.1}
  #allocation0 [shape = 'u32[]', space=smem, size = 0x4, offset = 0x4, fixed_abs, tag = 'smem constant byte address 0x4 - core index']
  #allocation1 [shape = 'u32[144,128]{1,0:T(1,128)}', space=vmem, size = 0x12000, scoped, tag = 'internal scratch']
  %s0 = inlined_call_operand.vmem [shape: f32[256,192], index: 0, kind: input, shape index: {}]
  %s1 = inlined_call_operand.vmem [shape: f32[1,192], index: 1, kind: input, shape index: {}]
  %s2 = inlined_call_operand.vmem [shape: f32[256,192], index: 2, kind: output, shape index: {}]
  %s3 = sld [smem:[#allocation0]]
  $region18: #{tpu_custom_call.1} parent=0
    _
  %s5 = ssub.s32 1, %s3
  %s6 = scalar_select 0, %s5, %s3
  // Predicated region
  $region2: #{tpu_custom_call.1} parent=0 // pred_check
    _
  $region3: #{tpu_custom_call.1} parent=0 // pred_check_branch
    %8 = sbr.rel (0) target = $region5
  $region4: #{tpu_custom_call.1} parent=0 // pred_region
    _
  $region5: #{tpu_custom_call.1} parent=0 // pred_fallthru
    _
  // Predicated region
  $region6: #{tpu_custom_call.1} parent=0 // pred_check
    _
  $region7: #{tpu_custom_call.1} parent=0 // pred_check_branch
    %10 = sbr.rel (0) target = $region9
  $region8: #{tpu_custom_call.1} parent=0 // pred_region
    _
  $region9: #{tpu_custom_call.1} parent=0 // pred_fallthru
    _
  %v11 = vld [vmem:[%s0] sm:$0xff]
  %v12 = vld [vmem:[%s0 + $0x8] sm:$0xff]
  %v13 = vld [vmem:[%s0 + $0x10] sm:$0xff]
  %v14 = vld [vmem:[%s0 + $0x18] sm:$0xff]
  %v15 = vld [vmem:[%s0 + $0x20] sm:$0xff]
  %v16 = vld [vmem:[%s0 + $0x28] sm:$0xff]
  %v17 = vld [vmem:[%s0 + $0x30] sm:$0xff]
  %v18 = vld [vmem:[%s0 + $0x38] sm:$0xff]
  %v19 = vld [vmem:[%s0 + $0x40] sm:$0xff]
  %v20 = vld [vmem:[%s0 + $0x48] sm:$0xff]
  %v21 = vld [vmem:[%s0 + $0x50] sm:$0xff]
  %v22 = vld [vmem:[%s0 + $0x58] sm:$0xff]
  %v23 = vld [vmem:[%s0 + $0x60] sm:$0xff]
  %v24 = vld [vmem:[%s0 + $0x68] sm:$0xff]
  %v25 = vld [vmem:[%s0 + $0x70] sm:$0xff]
  %v26 = vld [vmem:[%s0 + $0x78] sm:$0xff]
  %v27 = vld [vmem:[%s0 + $0x80] sm:$0xff]
  %v28 = vld [vmem:[%s0 + $0x88] sm:$0xff]
  %v29 = vld [vmem:[%s0 + $0x90] sm:$0xff]
  %v30 = vld [vmem:[%s0 + $0x98] sm:$0xff]
  %v31 = vld [vmem:[%s0 + $0xa0] sm:$0xff]
  %v32 = vld [vmem:[%s0 + $0xa8] sm:$0xff]
  %v33 = vld [vmem:[%s0 + $0xb0] sm:$0xff]
  %v34 = vld [vmem:[%s0 + $0xb8] sm:$0xff]
  %v35 = vld [vmem:[%s0 + $0xc0] sm:$0xff]
  %v36 = vld [vmem:[%s0 + $0xc8] sm:$0xff]
  %v37 = vld [vmem:[%s0 + $0xd0] sm:$0xff]
  %v38 = vld [vmem:[%s0 + $0xd8] sm:$0xff]
  %v39 = vld [vmem:[%s0 + $0xe0] sm:$0xff]
  %v40 = vld [vmem:[%s0 + $0xe8] sm:$0xff]
  %v41 = vld [vmem:[%s0 + $0xf0] sm:$0xff]
  %v42 = vld [vmem:[%s0 + $0xf8] sm:$0xff]
  %v43 = vld [vmem:[%s0 + $0x100] sm:$0xff]
  %v44 = vld [vmem:[%s0 + $0x108] sm:$0xff]
  %v45 = vld [vmem:[%s0 + $0x110] sm:$0xff]
  %v46 = vld [vmem:[%s0 + $0x118] sm:$0xff]
  %v47 = vld [vmem:[%s0 + $0x120] sm:$0xff]
  %v48 = vld [vmem:[%s0 + $0x128] sm:$0xff]
  %v49 = vld [vmem:[%s0 + $0x130] sm:$0xff]
  %v50 = vld [vmem:[%s0 + $0x138] sm:$0xff]
  %v51 = vld [vmem:[%s0 + $0x140] sm:$0xff]
  %v52 = vld [vmem:[%s0 + $0x148] sm:$0xff]
  %v53 = vld [vmem:[%s0 + $0x150] sm:$0xff]
  %v54 = vld [vmem:[%s0 + $0x158] sm:$0xff]
  %v55 = vld [vmem:[%s0 + $0x160] sm:$0xff]
  %v56 = vld [vmem:[%s0 + $0x168] sm:$0xff]
  %v57 = vld [vmem:[%s0 + $0x170] sm:$0xff]
  %v58 = vld [vmem:[%s0 + $0x178] sm:$0xff]
  %v59 = vld [vmem:[%s0 + $0x180] sm:$0xff]
  %v60 = vld [vmem:[%s0 + $0x188] sm:$0xff]
  %v61 = vld [vmem:[%s0 + $0x190] sm:$0xff]
  %v62 = vld [vmem:[%s0 + $0x198] sm:$0xff]
  %v63 = vld [vmem:[%s0 + $0x1a0] sm:$0xff]
  %v64 = vld [vmem:[%s0 + $0x1a8] sm:$0xff]
  %v65 = vld [vmem:[%s0 + $0x1b0] sm:$0xff]
  %v66 = vld [vmem:[%s0 + $0x1b8] sm:$0xff]
  %v67 = vld [vmem:[%s0 + $0x1c0] sm:$0xff]
  %v68 = vld [vmem:[%s0 + $0x1c8] sm:$0xff]
  %v69 = vld [vmem:[%s0 + $0x1d0] sm:$0xff]
  %v70 = vld [vmem:[%s0 + $0x1d8] sm:$0xff]
  %v71 = vld [vmem:[%s0 + $0x1e0] sm:$0xff]
  %v72 = vld [vmem:[%s0 + $0x1e8] sm:$0xff]
  %v73 = vld [vmem:[%s0 + $0x1f0] sm:$0xff]
  %v74 = vld [vmem:[%s0 + $0x1f8] sm:$0xff]
  %v75 = vld [vmem:[%s1] sm:$0x3]
  %v77 = vlaneseq
  %v78 = vshrl.u32 %v77, 7
  %v79 = vsub.s32 0, %v78
  %v80 = vrot.slane %v75, %v79
  %v81 = vlaneseq
  %v82 = vshrl.u32 %v81, 7
  %v83 = vsub.s32 1, %v82
  %v84 = vrot.slane %v75, %v83
  %v87 = vmul.f32 %v11, %v80
  %v88 = vmul.f32 %v12, %v84
  %v89 = vmul.f32 %v13, %v80
  %v90 = vmul.f32 %v14, %v84
  %v91 = vmul.f32 %v15, %v80
  %v92 = vmul.f32 %v16, %v84
  %v93 = vmul.f32 %v17, %v80
  %v94 = vmul.f32 %v18, %v84
  %v95 = vmul.f32 %v19, %v80
  %v96 = vmul.f32 %v20, %v84
  %v97 = vmul.f32 %v21, %v80
  %v98 = vmul.f32 %v22, %v84
  %v99 = vmul.f32 %v23, %v80
  %v100 = vmul.f32 %v24, %v84
  %v101 = vmul.f32 %v25, %v80
  %v102 = vmul.f32 %v26, %v84
  %v103 = vmul.f32 %v27, %v80
  %v104 = vmul.f32 %v28, %v84
  %v105 = vmul.f32 %v29, %v80
  %v106 = vmul.f32 %v30, %v84
  %v107 = vmul.f32 %v31, %v80
  %v108 = vmul.f32 %v32, %v84
  %v109 = vmul.f32 %v33, %v80
  %v110 = vmul.f32 %v34, %v84
  %v111 = vmul.f32 %v35, %v80
  %v112 = vmul.f32 %v36, %v84
  %v113 = vmul.f32 %v37, %v80
  %v114 = vmul.f32 %v38, %v84
  %v115 = vmul.f32 %v39, %v80
  %v116 = vmul.f32 %v40, %v84
  %v117 = vmul.f32 %v41, %v80
  %v118 = vmul.f32 %v42, %v84
  %v119 = vmul.f32 %v43, %v80
  %v120 = vmul.f32 %v44, %v84
  %v121 = vmul.f32 %v45, %v80
  %v122 = vmul.f32 %v46, %v84
  %v123 = vmul.f32 %v47, %v80
  %v124 = vmul.f32 %v48, %v84
  %v125 = vmul.f32 %v49, %v80
  %v126 = vmul.f32 %v50, %v84
  %v127 = vmul.f32 %v51, %v80
  %v128 = vmul.f32 %v52, %v84
  %v129 = vmul.f32 %v53, %v80
  %v130 = vmul.f32 %v54, %v84
  %v131 = vmul.f32 %v55, %v80
  %v132 = vmul.f32 %v56, %v84
  %v133 = vmul.f32 %v57, %v80
  %v134 = vmul.f32 %v58, %v84
  %v135 = vmul.f32 %v59, %v80
  %v136 = vmul.f32 %v60, %v84
  %v137 = vmul.f32 %v61, %v80
  %v138 = vmul.f32 %v62, %v84
  %v139 = vmul.f32 %v63, %v80
  %v140 = vmul.f32 %v64, %v84
  %v141 = vmul.f32 %v65, %v80
  %v142 = vmul.f32 %v66, %v84
  %v143 = vmul.f32 %v67, %v80
  %v144 = vmul.f32 %v68, %v84
  %v145 = vmul.f32 %v69, %v80
  %v146 = vmul.f32 %v70, %v84
  %v147 = vmul.f32 %v71, %v80
  %v148 = vmul.f32 %v72, %v84
  %v149 = vmul.f32 %v73, %v80
  %v150 = vmul.f32 %v74, %v84
  %151 = vst [vmem:[%s2] sm:$0xff] %v87
  %vm152 = vcmask 523264
  %153 = vst.msk [vmem:[%s2 + $0x8] sm:$0xff] %vm152, %v88
  %154 = vst [vmem:[%s2 + $0x10] sm:$0xff] %v89
  %155 = vst.msk [vmem:[%s2 + $0x18] sm:$0xff] %vm152, %v90
  %156 = vst [vmem:[%s2 + $0x20] sm:$0xff] %v91
  %157 = vst.msk [vmem:[%s2 + $0x28] sm:$0xff] %vm152, %v92
  %158 = vst [vmem:[%s2 + $0x30] sm:$0xff] %v93
  %159 = vst.msk [vmem:[%s2 + $0x38] sm:$0xff] %vm152, %v94
  %160 = vst [vmem:[%s2 + $0x40] sm:$0xff] %v95
  %161 = vst.msk [vmem:[%s2 + $0x48] sm:$0xff] %vm152, %v96
  %162 = vst [vmem:[%s2 + $0x50] sm:$0xff] %v97
  %163 = vst.msk [vmem:[%s2 + $0x58] sm:$0xff] %vm152, %v98
  %164 = vst [vmem:[%s2 + $0x60] sm:$0xff] %v99
  %165 = vst.msk [vmem:[%s2 + $0x68] sm:$0xff] %vm152, %v100
  %166 = vst [vmem:[%s2 + $0x70] sm:$0xff] %v101
  %167 = vst.msk [vmem:[%s2 + $0x78] sm:$0xff] %vm152, %v102
  %168 = vst [vmem:[%s2 + $0x80] sm:$0xff] %v103
  %169 = vst.msk [vmem:[%s2 + $0x88] sm:$0xff] %vm152, %v104
  %170 = vst [vmem:[%s2 + $0x90] sm:$0xff] %v105
  %171 = vst.msk [vmem:[%s2 + $0x98] sm:$0xff] %vm152, %v106
  %172 = vst [vmem:[%s2 + $0xa0] sm:$0xff] %v107
  %173 = vst.msk [vmem:[%s2 + $0xa8] sm:$0xff] %vm152, %v108
  %174 = vst [vmem:[%s2 + $0xb0] sm:$0xff] %v109
  %175 = vst.msk [vmem:[%s2 + $0xb8] sm:$0xff] %vm152, %v110
  %176 = vst [vmem:[%s2 + $0xc0] sm:$0xff] %v111
  %177 = vst.msk [vmem:[%s2 + $0xc8] sm:$0xff] %vm152, %v112
  %178 = vst [vmem:[%s2 + $0xd0] sm:$0xff] %v113
  %179 = vst.msk [vmem:[%s2 + $0xd8] sm:$0xff] %vm152, %v114
  %180 = vst [vmem:[%s2 + $0xe0] sm:$0xff] %v115
  %181 = vst.msk [vmem:[%s2 + $0xe8] sm:$0xff] %vm152, %v116
  %182 = vst [vmem:[%s2 + $0xf0] sm:$0xff] %v117
  %183 = vst.msk [vmem:[%s2 + $0xf8] sm:$0xff] %vm152, %v118
  %184 = vst [vmem:[%s2 + $0x100] sm:$0xff] %v119
  %185 = vst.msk [vmem:[%s2 + $0x108] sm:$0xff] %vm152, %v120
  %186 = vst [vmem:[%s2 + $0x110] sm:$0xff] %v121
  %187 = vst.msk [vmem:[%s2 + $0x118] sm:$0xff] %vm152, %v122
  %188 = vst [vmem:[%s2 + $0x120] sm:$0xff] %v123
  %189 = vst.msk [vmem:[%s2 + $0x128] sm:$0xff] %vm152, %v124
  %190 = vst [vmem:[%s2 + $0x130] sm:$0xff] %v125
  %191 = vst.msk [vmem:[%s2 + $0x138] sm:$0xff] %vm152, %v126
  %192 = vst [vmem:[%s2 + $0x140] sm:$0xff] %v127
  %193 = vst.msk [vmem:[%s2 + $0x148] sm:$0xff] %vm152, %v128
  %194 = vst [vmem:[%s2 + $0x150] sm:$0xff] %v129
  %195 = vst.msk [vmem:[%s2 + $0x158] sm:$0xff] %vm152, %v130
  %196 = vst [vmem:[%s2 + $0x160] sm:$0xff] %v131
  %197 = vst.msk [vmem:[%s2 + $0x168] sm:$0xff] %vm152, %v132
  %198 = vst [vmem:[%s2 + $0x170] sm:$0xff] %v133
  %199 = vst.msk [vmem:[%s2 + $0x178] sm:$0xff] %vm152, %v134
  %200 = vst [vmem:[%s2 + $0x180] sm:$0xff] %v135
  %201 = vst.msk [vmem:[%s2 + $0x188] sm:$0xff] %vm152, %v136
  %202 = vst [vmem:[%s2 + $0x190] sm:$0xff] %v137
  %203 = vst.msk [vmem:[%s2 + $0x198] sm:$0xff] %vm152, %v138
  %204 = vst [vmem:[%s2 + $0x1a0] sm:$0xff] %v139
  %205 = vst.msk [vmem:[%s2 + $0x1a8] sm:$0xff] %vm152, %v140
  %206 = vst [vmem:[%s2 + $0x1b0] sm:$0xff] %v141
  %207 = vst.msk [vmem:[%s2 + $0x1b8] sm:$0xff] %vm152, %v142
  %208 = vst [vmem:[%s2 + $0x1c0] sm:$0xff] %v143
  %209 = vst.msk [vmem:[%s2 + $0x1c8] sm:$0xff] %vm152, %v144
  %210 = vst [vmem:[%s2 + $0x1d0] sm:$0xff] %v145
  %211 = vst.msk [vmem:[%s2 + $0x1d8] sm:$0xff] %vm152, %v146
  %212 = vst [vmem:[%s2 + $0x1e0] sm:$0xff] %v147
  %213 = vst.msk [vmem:[%s2 + $0x1e8] sm:$0xff] %vm152, %v148
  %214 = vst [vmem:[%s2 + $0x1f0] sm:$0xff] %v149
  %215 = vst.msk [vmem:[%s2 + $0x1f8] sm:$0xff] %vm152, %v150
  // Predicated region
  $region10: #{tpu_custom_call.1} parent=0 // pred_check
    _
  $region11: #{tpu_custom_call.1} parent=0 // pred_check_branch
    %217 = sbr.rel (0) target = $region13
  $region12: #{tpu_custom_call.1} parent=0 // pred_region
    _
  $region13: #{tpu_custom_call.1} parent=0 // pred_fallthru
    _
  // Predicated region
  $region14: #{tpu_custom_call.1} parent=0 // pred_check
    _
  $region15: #{tpu_custom_call.1} parent=0 // pred_check_branch
    %219 = sbr.rel (0) target = $region17
  $region16: #{tpu_custom_call.1} parent=0 // pred_region
    _
  $region17: #{tpu_custom_call.1} parent=0 // pred_fallthru
    _

</llo_original>
